<compile_context>
chip_gen: v7x
topology: tpu7x:2x2x1
jax: 0.10.0
libtpu: 0.0.40
codegen_flags: <defaults>
</compile_context>

<pallas_src>
import math

import jax
import jax.numpy as jnp
from jax.experimental import pallas as pl
from jax.experimental.pallas import tpu as pltpu

DMODEL = 64
HEADS = 8
KEY_DIM = DMODEL // HEADS


def mha_kernel(x_ref, wqkv_ref, wo_ref, o_ref):
    """Whole MHA forward in one kernel invocation (shapes are small)."""
    B, S, D = x_ref.shape
    H = HEADS
    Kd = D // H
    HS = H * S

    x2 = x_ref[...].reshape(B * S, D).astype(jnp.float32)

    # Fused Q/K/V projection: one MXU matmul instead of three.
    # (1/sqrt(Kd) is already folded into the Q columns by the wrapper.)
    qkv = jnp.dot(x2, wqkv_ref[...], preferred_element_type=jnp.float32)  # (B*S, 3D)
    q = qkv[:, :D].reshape(B, S, D)
    k = qkv[:, D:2 * D].reshape(B, S, D)
    v = qkv[:, 2 * D:].reshape(B, S, D)

    # head_mask[h, d] = 1 iff embedding column d belongs to head h.
    d_ids = jax.lax.broadcasted_iota(jnp.int32, (H, D), 1)
    h_ids = jax.lax.broadcasted_iota(jnp.int32, (H, D), 0)
    head_mask = ((d_ids >= h_ids * Kd) & (d_ids < (h_ids + 1) * Kd)).astype(jnp.float32)

    # Head-masked K / V: row (h*S + j) holds k[b, j, :] zeroed outside head h's
    # columns.  One batched, lane-wide matmul then yields every head's result —
    # no per-head slicing, no (B,S,H,Kd) transposes, no concatenate.
    k_exp = (k[:, None, :, :] * head_mask[None, :, None, :]).reshape(B, HS, D)
    v_exp = (v[:, None, :, :] * head_mask[None, :, None, :]).reshape(B, HS, D)

    # scores[b, i, h*S + j] = <q_h[b, i], k_h[b, j]> / sqrt(Kd)
    scores = jnp.einsum("bqd,bnd->bqn", q, k_exp,
                        preferred_element_type=jnp.float32)       # (B, S, HS)

    # Per-head softmax over j; stabilised with the per-row global max, which is
    # mathematically equivalent to the per-head max (constant shift cancels).
    row_max = jnp.max(scores, axis=-1, keepdims=True)
    p = jnp.exp(scores - row_max)                                  # (B, S, HS)

    # Segment (per-head) sums via tiny 0/1 matmuls, then normalise with an EUP
    # reciprocal so the divide doesn't occupy VPU slots.
    n_ids = jax.lax.broadcasted_iota(jnp.int32, (HS, H), 0)
    g_ids = jax.lax.broadcasted_iota(jnp.int32, (HS, H), 1)
    seg_nh = ((n_ids >= g_ids * S) & (n_ids < (g_ids + 1) * S)).astype(jnp.float32)
    nT_ids = jax.lax.broadcasted_iota(jnp.int32, (H, HS), 1)
    gT_ids = jax.lax.broadcasted_iota(jnp.int32, (H, HS), 0)
    seg_hn = ((nT_ids >= gT_ids * S) & (nT_ids < (gT_ids + 1) * S)).astype(jnp.float32)

    p2 = p.reshape(B * S, HS)
    denom_h = jnp.dot(p2, seg_nh, preferred_element_type=jnp.float32)     # (B*S, H)
    denom = jnp.dot(denom_h, seg_hn, preferred_element_type=jnp.float32)  # (B*S, HS)
    soft = (p2 * pl.reciprocal(denom, approx=True)).reshape(B, S, HS)

    # out[b, i, d] = sum_j soft[b, i, h(d)*S + j] * v[b, j, d]; heads land
    # already concatenated along the lane axis.
    out = jnp.einsum("bqn,bnd->bqd", soft, v_exp,
                     preferred_element_type=jnp.float32)           # (B, S, D)
    out2 = out.reshape(B * S, D)

    # torch: if out.max() > 1.0: out /= sqrt(out.max())
    # Clamp the sqrt argument so the unselected branch never produces NaN.
    m = jnp.max(out2)
    scale = jnp.where(m > 1.0, 1.0 / jnp.sqrt(jnp.maximum(m, 1.0)), jnp.float32(1.0))
    out2 = out2 * scale

    # Final output projection (bias-free linear).
    proj = jnp.dot(out2, wo_ref[...], preferred_element_type=jnp.float32)
    o_ref[...] = proj.reshape(B, S, D)


@jax.jit
def multi_head_attention(x, wq_t, wk_t, wv_t, wo_t):
    """x: (B, S, DMODEL) float32; w*_t: (DMODEL, DMODEL) in (in, out) layout."""
    B, S, D = x.shape
    inv_sqrt_kd = 1.0 / math.sqrt(D // HEADS)
    # Fuse the three projection weights; fold the score scale into Wq.
    wqkv = jnp.concatenate([wq_t * inv_sqrt_kd, wk_t, wv_t], axis=1)  # (D, 3D)
    return pl.pallas_call(
        mha_kernel,
        out_shape=jax.ShapeDtypeStruct((B, S, D), jnp.float32),
        in_specs=[pl.BlockSpec(memory_space=pltpu.MemorySpace.VMEM)] * 3,
        out_specs=pl.BlockSpec(memory_space=pltpu.MemorySpace.VMEM),
    )(x, wqkv, wo_t)


def reference_mha(x, wq_t, wk_t, wv_t, wo_t):
    """Pure-JAX reference mirroring the PyTorch forward."""
    B, S, D = x.shape
    H, Kd = HEADS, KEY_DIM

    def proj(w_t):
        return (x @ w_t).reshape(B, S, H, Kd).transpose(0, 2, 1, 3)  # (B,H,S,Kd)

    q, k, v = proj(wq_t), proj(wk_t), proj(wv_t)
    score = jnp.einsum("bhqd,bhkd->bhqk", q, k) / math.sqrt(Kd)
    soft = jax.nn.softmax(score, axis=-1)
    out = jnp.einsum("bhqk,bhkd->bhqd", soft, v)
    out = out.transpose(0, 2, 1, 3).reshape(B, S, D)
    m = jnp.max(out)
    out = jnp.where(m > 1.0, out / jnp.sqrt(m), out)
    return out @ wo_t


if __name__ == "__main__":
    B, S = 2, 8

    key = jax.random.PRNGKey(0)
    kx, kq, kk, kv, ko = jax.random.split(key, 5)

    # Mimic nn.Linear default init U(-1/sqrt(fan_in), +1/sqrt(fan_in)).
    bound = 1.0 / math.sqrt(DMODEL)
    wq_t = jax.random.uniform(kq, (DMODEL, DMODEL), jnp.float32, -bound, bound)
    wk_t = jax.random.uniform(kk, (DMODEL, DMODEL), jnp.float32, -bound, bound)
    wv_t = jax.random.uniform(kv, (DMODEL, DMODEL), jnp.float32, -bound, bound)
    wo_t = jax.random.uniform(ko, (DMODEL, DMODEL), jnp.float32, -bound, bound)

    x = jax.random.normal(kx, (B, S, DMODEL), jnp.float32)

    out = multi_head_attention(x, wq_t, wk_t, wv_t, wo_t)
    out = jax.block_until_ready(out)

    ref = reference_mha(x, wq_t, wk_t, wv_t, wo_t)
    assert out.shape == (B, S, DMODEL)
    # Only deviation from exact f32 math is the EUP approx reciprocal in the
    # softmax normalisation, hence the slightly relaxed tolerance.
    assert jnp.allclose(out, ref, atol=2e-3, rtol=2e-3), "mismatch vs reference"

    print("KERNEL_OK")
</pallas_src>

<mosaic_0001>
module attributes {stable_mosaic.version = 11 : i64} {
  func.func @mha_kernel(%arg0: memref<2x8x64xf32, #tpu.memory_space<vmem>>, %arg1: memref<64x192xf32, #tpu.memory_space<vmem>>, %arg2: memref<64x64xf32, #tpu.memory_space<vmem>>, %arg3: memref<2x8x64xf32, #tpu.memory_space<vmem>>) attributes {dimension_semantics = [], scalar_prefetch = 0 : i64, scratch_operands = 0 : i64, tpu.core_type = #tpu.core_type<tc>} {
    %c0 = arith.constant 0 : index
    %c0_0 = arith.constant 0 : index
    %c0_1 = arith.constant 0 : index
    %0 = vector.load %arg0[%c0, %c0_0, %c0_1] : memref<2x8x64xf32, #tpu.memory_space<vmem>>, vector<2x8x64xf32>
    %1 = vector.shape_cast %0 : vector<2x8x64xf32> to vector<16x64xf32>
    %c0_2 = arith.constant 0 : index
    %c0_3 = arith.constant 0 : index
    %2 = vector.load %arg1[%c0_2, %c0_3] : memref<64x192xf32, #tpu.memory_space<vmem>>, vector<64x192xf32>
    %cst = arith.constant dense<0.000000e+00> : vector<16x192xf32>
    %3 = tpu.matmul %1, %2, %cst {dimension_numbers = #tpu.dot_dimension_numbers<[1], [0], [0], [1], [0, 0, 1, 1], [], []>} : vector<16x64xf32>, vector<64x192xf32>, vector<16x192xf32> -> vector<16x192xf32>
    %4 = vector.extract_strided_slice %3 {offsets = [0, 0], sizes = [16, 64], strides = [1, 1]} : vector<16x192xf32> to vector<16x64xf32>
    %5 = vector.shape_cast %4 : vector<16x64xf32> to vector<2x8x64xf32>
    %6 = vector.extract_strided_slice %3 {offsets = [0, 64], sizes = [16, 64], strides = [1, 1]} : vector<16x192xf32> to vector<16x64xf32>
    %7 = vector.shape_cast %6 : vector<16x64xf32> to vector<2x8x64xf32>
    %8 = vector.extract_strided_slice %3 {offsets = [0, 128], sizes = [16, 64], strides = [1, 1]} : vector<16x192xf32> to vector<16x64xf32>
    %9 = vector.shape_cast %8 : vector<16x64xf32> to vector<2x8x64xf32>
    %10 = tpu.iota {dimensions = array<i32: 1>} : vector<8x64xi32>
    %11 = tpu.iota {dimensions = array<i32: 0>} : vector<8x64xi32>
    %c8_i32 = arith.constant 8 : i32
    %12 = vector.broadcast %c8_i32 : i32 to vector<8x64xi32>
    %13 = arith.muli %11, %12 : vector<8x64xi32>
    %14 = arith.cmpi sge, %10, %13 : vector<8x64xi32>
    %c1_i32 = arith.constant 1 : i32
    %15 = vector.broadcast %c1_i32 : i32 to vector<8x64xi32>
    %16 = arith.addi %11, %15 : vector<8x64xi32>
    %c8_i32_4 = arith.constant 8 : i32
    %17 = vector.broadcast %c8_i32_4 : i32 to vector<8x64xi32>
    %18 = arith.muli %16, %17 : vector<8x64xi32>
    %19 = arith.cmpi slt, %10, %18 : vector<8x64xi32>
    %20 = arith.andi %14, %19 : vector<8x64xi1>
    %21 = arith.extui %20 : vector<8x64xi1> to vector<8x64xi32>
    %22 = arith.sitofp %21 : vector<8x64xi32> to vector<8x64xf32>
    %23 = vector.shape_cast %7 : vector<2x8x64xf32> to vector<2x1x8x64xf32>
    %24 = vector.shape_cast %22 : vector<8x64xf32> to vector<1x8x1x64xf32>
    %25 = vector.broadcast %23 : vector<2x1x8x64xf32> to vector<2x8x8x64xf32>
    %26 = vector.broadcast %24 : vector<1x8x1x64xf32> to vector<2x8x8x64xf32>
    %27 = arith.mulf %25, %26 : vector<2x8x8x64xf32>
    %28 = vector.shape_cast %27 : vector<2x8x8x64xf32> to vector<2x64x64xf32>
    %29 = vector.shape_cast %9 : vector<2x8x64xf32> to vector<2x1x8x64xf32>
    %30 = vector.shape_cast %22 : vector<8x64xf32> to vector<1x8x1x64xf32>
    %31 = vector.broadcast %29 : vector<2x1x8x64xf32> to vector<2x8x8x64xf32>
    %32 = vector.broadcast %30 : vector<1x8x1x64xf32> to vector<2x8x8x64xf32>
    %33 = arith.mulf %31, %32 : vector<2x8x8x64xf32>
    %34 = vector.shape_cast %33 : vector<2x8x8x64xf32> to vector<2x64x64xf32>
    "tpu.trace_start"() <{level = 10 : i32, message = "bqd,bnd->bqn"}> : () -> ()
    %cst_5 = arith.constant dense<0.000000e+00> : vector<2x8x64xf32>
    %35 = tpu.matmul %5, %28, %cst_5 {dimension_numbers = #tpu.dot_dimension_numbers<[2], [2], [1], [1], [0, 0, 0, 1, 1, 1], [0], [0]>} : vector<2x8x64xf32>, vector<2x64x64xf32>, vector<2x8x64xf32> -> vector<2x8x64xf32>
    "tpu.trace_stop"() : () -> ()
    %cst_6 = arith.constant dense<0xFF800000> : vector<2x8xf32>
    %36 = vector.multi_reduction <maximumf>, %35, %cst_6 [2] : vector<2x8x64xf32> to vector<2x8xf32>
    %37 = vector.shape_cast %36 : vector<2x8xf32> to vector<2x8x1xf32>
    %38 = vector.broadcast %37 : vector<2x8x1xf32> to vector<2x8x64xf32>
    %39 = arith.subf %35, %38 : vector<2x8x64xf32>
    %40 = math.exp %39 : vector<2x8x64xf32>
    %41 = tpu.iota {dimensions = array<i32: 0>} : vector<64x8xi32>
    %42 = tpu.iota {dimensions = array<i32: 1>} : vector<64x8xi32>
    %c8_i32_7 = arith.constant 8 : i32
    %43 = vector.broadcast %c8_i32_7 : i32 to vector<64x8xi32>
    %44 = arith.muli %42, %43 : vector<64x8xi32>
    %45 = arith.cmpi sge, %41, %44 : vector<64x8xi32>
    %c1_i32_8 = arith.constant 1 : i32
    %46 = vector.broadcast %c1_i32_8 : i32 to vector<64x8xi32>
    %47 = arith.addi %42, %46 : vector<64x8xi32>
    %c8_i32_9 = arith.constant 8 : i32
    %48 = vector.broadcast %c8_i32_9 : i32 to vector<64x8xi32>
    %49 = arith.muli %47, %48 : vector<64x8xi32>
    %50 = arith.cmpi slt, %41, %49 : vector<64x8xi32>
    %51 = arith.andi %45, %50 : vector<64x8xi1>
    %52 = arith.extui %51 : vector<64x8xi1> to vector<64x8xi32>
    %53 = arith.sitofp %52 : vector<64x8xi32> to vector<64x8xf32>
    %54 = tpu.iota {dimensions = array<i32: 1>} : vector<8x64xi32>
    %55 = tpu.iota {dimensions = array<i32: 0>} : vector<8x64xi32>
    %c8_i32_10 = arith.constant 8 : i32
    %56 = vector.broadcast %c8_i32_10 : i32 to vector<8x64xi32>
    %57 = arith.muli %55, %56 : vector<8x64xi32>
    %58 = arith.cmpi sge, %54, %57 : vector<8x64xi32>
    %c1_i32_11 = arith.constant 1 : i32
    %59 = vector.broadcast %c1_i32_11 : i32 to vector<8x64xi32>
    %60 = arith.addi %55, %59 : vector<8x64xi32>
    %c8_i32_12 = arith.constant 8 : i32
    %61 = vector.broadcast %c8_i32_12 : i32 to vector<8x64xi32>
    %62 = arith.muli %60, %61 : vector<8x64xi32>
    %63 = arith.cmpi slt, %54, %62 : vector<8x64xi32>
    %64 = arith.andi %58, %63 : vector<8x64xi1>
    %65 = arith.extui %64 : vector<8x64xi1> to vector<8x64xi32>
    %66 = arith.sitofp %65 : vector<8x64xi32> to vector<8x64xf32>
    %67 = vector.shape_cast %40 : vector<2x8x64xf32> to vector<16x64xf32>
    %cst_13 = arith.constant dense<0.000000e+00> : vector<16x8xf32>
    %68 = tpu.matmul %67, %53, %cst_13 {dimension_numbers = #tpu.dot_dimension_numbers<[1], [0], [0], [1], [0, 0, 1, 1], [], []>} : vector<16x64xf32>, vector<64x8xf32>, vector<16x8xf32> -> vector<16x8xf32>
    %cst_14 = arith.constant dense<0.000000e+00> : vector<16x64xf32>
    %69 = tpu.matmul %68, %66, %cst_14 {dimension_numbers = #tpu.dot_dimension_numbers<[1], [0], [0], [1], [0, 0, 1, 1], [], []>} : vector<16x8xf32>, vector<8x64xf32>, vector<16x64xf32> -> vector<16x64xf32>
    %70 = tpu.reciprocal %69 {approx = true} : vector<16x64xf32> -> vector<16x64xf32>
    %71 = arith.mulf %67, %70 : vector<16x64xf32>
    %72 = vector.shape_cast %71 : vector<16x64xf32> to vector<2x8x64xf32>
    "tpu.trace_start"() <{level = 10 : i32, message = "bqn,bnd->bqd"}> : () -> ()
    %cst_15 = arith.constant dense<0.000000e+00> : vector<2x8x64xf32>
    %73 = tpu.matmul %72, %34, %cst_15 {dimension_numbers = #tpu.dot_dimension_numbers<[2], [1], [1], [2], [0, 0, 0, 1, 1, 2], [0], [0]>} : vector<2x8x64xf32>, vector<2x64x64xf32>, vector<2x8x64xf32> -> vector<2x8x64xf32>
    "tpu.trace_stop"() : () -> ()
    %74 = vector.shape_cast %73 : vector<2x8x64xf32> to vector<16x64xf32>
    %75 = vector.shape_cast %74 : vector<16x64xf32> to vector<1x16x64xf32>
    %cst_16 = arith.constant dense<0xFF800000> : vector<1xf32>
    %76 = vector.multi_reduction <maximumf>, %75, %cst_16 [1, 2] : vector<1x16x64xf32> to vector<1xf32>
    %77 = vector.shape_cast %76 : vector<1xf32> to vector<1x1x1xf32>
    %78 = vector.extract %77[0, 0, 0] : f32 from vector<1x1x1xf32>
    %cst_17 = arith.constant 1.000000e+00 : f32
    %79 = arith.cmpf ogt, %78, %cst_17 : f32
    %cst_18 = arith.constant 1.000000e+00 : f32
    %80 = arith.maximumf %78, %cst_18 : f32
    %81 = math.sqrt %80 : f32
    %cst_19 = arith.constant 1.000000e+00 : f32
    %82 = arith.divf %cst_19, %81 : f32
    %cst_20 = arith.constant 1.000000e+00 : f32
    %83 = arith.select %79, %82, %cst_20 : f32
    %84 = vector.broadcast %83 : f32 to vector<16x64xf32>
    %85 = arith.mulf %74, %84 : vector<16x64xf32>
    %c0_21 = arith.constant 0 : index
    %c0_22 = arith.constant 0 : index
    %86 = vector.load %arg2[%c0_21, %c0_22] : memref<64x64xf32, #tpu.memory_space<vmem>>, vector<64x64xf32>
    %cst_23 = arith.constant dense<0.000000e+00> : vector<16x64xf32>
    %87 = tpu.matmul %85, %86, %cst_23 {dimension_numbers = #tpu.dot_dimension_numbers<[1], [0], [0], [1], [0, 0, 1, 1], [], []>} : vector<16x64xf32>, vector<64x64xf32>, vector<16x64xf32> -> vector<16x64xf32>
    %88 = vector.shape_cast %87 : vector<16x64xf32> to vector<2x8x64xf32>
    %c0_24 = arith.constant 0 : index
    %c0_25 = arith.constant 0 : index
    %c0_26 = arith.constant 0 : index
    %89 = vector.load %arg3[%c0_24, %c0_25, %c0_26] : memref<2x8x64xf32, #tpu.memory_space<vmem>>, vector<2x8x64xf32>
    tpu.vector_store %arg3[%c0_24, %c0_25, %c0_26], %88 {strides = array<i32>} : memref<2x8x64xf32, #tpu.memory_space<vmem>>, vector<2x8x64xf32>,
    return
  }
}

</mosaic_0001>

<llo_original>
// kernel: multi_head_attention.1
$region0: #{multi_head_attention.1}
  #allocation0 [shape = 'u32[]', space=smem, size = 0x4, offset = 0x4, fixed_abs, tag = 'smem constant byte address 0x4 - core index']
  #allocation1 [shape = 'u32[144,128]{1,0:T(1,128)}', space=vmem, size = 0x12000, scoped, tag = 'internal scratch']
  %s0 = inlined_call_operand.vmem [shape: f32[2,8,64], index: 0, kind: input, shape index: {}]
  %s1 = inlined_call_operand.vmem [shape: f32[64,192], index: 1, kind: input, shape index: {}]
  %s2 = inlined_call_operand.vmem [shape: f32[64,64], index: 2, kind: input, shape index: {}]
  %s3 = inlined_call_operand.hbm [shape: f32[2,8,64], index: 3, kind: output, shape index: {}]
  %s4 = sld [smem:[#allocation0]]
  $region22: #{multi_head_attention.1} parent=0
    _
  %s6 = ssub.s32 1, %s4
  %s7 = scalar_select 0, %s6, %s4
  $region1: #{multi_head_attention.1} parent=0
    #allocation2 [shape = 'u8[8192]{0}', space=vmem, size = 0x2000, scoped, tag = 'output window, operand 0, single buffered']
    #allocation3 [shape = 's32[1]{0}', space=sflag, size = 0x4, scoped, tag = 'scoped memory for multi_head_attention.1']
    %8 = vsyncpa [#allocation3], 0
    // Predicated region
    $region2: #{multi_head_attention.1} parent=1 // pred_check
      _
    $region3: #{multi_head_attention.1} parent=1 // pred_check_branch
      %10 = sbr.rel (0) target = $region5
    $region4: #{multi_head_attention.1} parent=1 // pred_region
      _
    $region5: #{multi_head_attention.1} parent=1 // pred_fallthru
      _
    // Predicated region
    $region6: #{multi_head_attention.1} parent=1 // pred_check
      _
    $region7: #{multi_head_attention.1} parent=1 // pred_check_branch
      %12 = sbr.rel (0) target = $region9
    $region8: #{multi_head_attention.1} parent=1 // pred_region
      _
    $region9: #{multi_head_attention.1} parent=1 // pred_fallthru
      _
    // Predicated region
    $region10: #{multi_head_attention.1} parent=1 // pred_check
      _
    $region11: #{multi_head_attention.1} parent=1 // pred_check_branch
      %14 = sbr.rel (0) target = $region13
    $region12: #{multi_head_attention.1} parent=1 // pred_region
      _
    $region13: #{multi_head_attention.1} parent=1 // pred_fallthru
      _
    %v15 = vld [vmem:[%s0] sm:$0xff]
    %v16 = vld [vmem:[%s0 + $0x8] sm:$0xff]
    %v17 = vld [vmem:[%s1] sm:$0xff]
    %v18 = vld [vmem:[%s1 + $0x8] sm:$0xff]
    %v19 = vld [vmem:[%s1 + $0x10] sm:$0xff]
    %v20 = vld [vmem:[%s1 + $0x18] sm:$0xff]
    %v21 = vld [vmem:[%s1 + $0x20] sm:$0xff]
    %v22 = vld [vmem:[%s1 + $0x28] sm:$0xff]
    %v23 = vld [vmem:[%s1 + $0x30] sm:$0xff]
    %v24 = vld [vmem:[%s1 + $0x38] sm:$0xff]
    %v25 = vld [vmem:[%s1 + $0x40] sm:$0xff]
    %v26 = vld [vmem:[%s1 + $0x48] sm:$0xff]
    %v27 = vld [vmem:[%s1 + $0x50] sm:$0xff]
    %v28 = vld [vmem:[%s1 + $0x58] sm:$0xff]
    %v29 = vld [vmem:[%s1 + $0x60] sm:$0xff]
    %v30 = vld [vmem:[%s1 + $0x68] sm:$0xff]
    %v31 = vld [vmem:[%s1 + $0x70] sm:$0xff]
    %v32 = vld [vmem:[%s1 + $0x78] sm:$0xff]
    %vm33 = vcmask 523264
    %v35 = vsel %vm33, %v15, 0
    %v38 = vsel %vm33, %v16, 0
    %40 = vmatprep.subr.mxu0 %v18
    %41 = vmatpush1.msra.mxu0 %v17
    %42 = vmatprep.subr.mxu0 %v20
    %43 = vmatpush1.msra.mxu0 %v19
    %44 = vmatprep.subr.mxu0 %v22
    %45 = vmatpush1.msra.mxu0 %v21
    %46 = vmatprep.subr.mxu0 %v24
    %47 = vmatpush1.msra.mxu0 %v23
    %48 = vmatprep.subr.mxu0 %v26
    %49 = vmatpush1.msra.mxu0 %v25
    %50 = vmatprep.subr.mxu0 %v28
    %51 = vmatpush1.msra.mxu0 %v27
    %52 = vmatprep.subr.mxu0 %v30
    %53 = vmatpush1.msra.mxu0 %v29
    %54 = vmatprep.subr.mxu0 %v32
    %55 = vmatpush1.msra.mxu0 %v31
    %56 = vmatprep.subr.mxu0 0.0
    %57 = vmatpush1.msra.mxu0 0.0
    %58 = vmatprep.subr.mxu0 0.0
    %59 = vmatpush1.msra.mxu0 0.0
    %60 = vmatprep.subr.mxu0 0.0
    %61 = vmatpush1.msra.mxu0 0.0
    %62 = vmatprep.subr.mxu0 0.0
    %63 = vmatpush1.msra.mxu0 0.0
    %64 = vmatprep.subr.mxu0 0.0
    %65 = vmatpush1.msra.mxu0 0.0
    %66 = vmatprep.subr.mxu0 0.0
    %67 = vmatpush1.msra.mxu0 0.0
    %68 = vmatprep.subr.mxu0 0.0
    %69 = vmatpush1.msra.mxu0 0.0
    %70 = vmatprep.subr.mxu0 0.0
    %71 = vmatpush1.msra.mxu0 0.0
    %72 = vmatprep.subr.mxu0 0.0
    %73 = vmatpush1.msra.mxu0 0.0
    %74 = vmatprep.subr.mxu0 0.0
    %75 = vmatpush1.msra.mxu0 0.0
    %76 = vmatprep.subr.mxu0 0.0
    %77 = vmatpush1.msra.mxu0 0.0
    %78 = vmatprep.subr.mxu0 0.0
    %79 = vmatpush1.msra.mxu0 0.0
    %80 = vmatprep.subr.mxu0 0.0
    %81 = vmatpush1.msra.mxu0 0.0
    %82 = vmatprep.subr.mxu0 0.0
    %83 = vmatpush1.msra.mxu0 0.0
    %84 = vmatprep.subr.mxu0 0.0
    %85 = vmatpush1.msra.mxu0 0.0
    %86 = vmatprep.subr.mxu0 0.0
    %87 = vmatpush1.msra.mxu0 0.0
    %88 = vmatprep.subr.mxu0 0.0
    %89 = vmatpush1.msra.mxu0 0.0
    %90 = vmatprep.subr.mxu0 0.0
    %91 = vmatpush1.msra.mxu0 0.0
    %92 = vmatprep.subr.mxu0 0.0
    %93 = vmatpush1.msra.mxu0 0.0
    %94 = vmatprep.subr.mxu0 0.0
    %95 = vmatpush1.msra.mxu0 0.0
    %96 = vmatprep.subr.mxu0 0.0
    %97 = vmatpush1.msra.mxu0 0.0
    %98 = vmatprep.subr.mxu0 0.0
    %99 = vmatpush1.msra.mxu0 0.0
    %100 = vmatprep.subr.mxu0 0.0
    %101 = vmatpush1.msra.mxu0 0.0
    %102 = vmatprep.subr.mxu0 0.0
    %103 = vmatpush1.msra.mxu0 0.0
    %104 = vmatprep.mubr.f32.mxu0 0.0
    %105 = vmatmul.mubr.f32.gmra.mrb[0].mxu0 %v35
    %v106 = vpop.f32.mrb[0].mxu0
    %v107 = vadd.f32 0.0, %v106
    %v108 = vpop.f32.mrb[0].mxu0
    %v109 = vadd.f32 0.0, %v108
    %110 = vmatprep.mubr.f32.mxu0 0.0
    %111 = vmatmul.mubr.f32.gmra.mrb[0].mxu0 %v38
    %v112 = vpop.f32.mrb[0].mxu0
    %v113 = vadd.f32 0.0, %v112
    %v114 = vpop.f32.mrb[0].mxu0
    %v115 = vadd.f32 0.0, %v114
    %116 = vdwg.mxu0
    %v117 = vlaneseq
    %v118 = vand.u32 %v117, 127
    %v119 = vlaneseq
    %v120 = vshrl.u32 %v119, 7
    %v121 = vmul.u32 %v120, 8
    %vm122 = vcmp.ge.s32.totalorder %v118, %v121
    %v123 = vadd.s32 %v120, 1
    %v124 = vmul.u32 %v123, 8
    %vm125 = vcmp.lt.s32.totalorder %v118, %v124
    %vm126 = vmand %vm122, %vm125
    %v127 = vsel %vm126, 1, 0
    %v128 = vcvt.s32.f32 %v127
    %v130 = vcombine.high %v128, %v128
    %v132 = vunpack.c.l.s4 1966171168
    %v133 = vunpack.c.0.s8 %v132
    %v134 = vlaneseq
    %v135 = vshrl.u32 %v134, 7
    %v136 = vsub.s32 %v133, %v135
    %v137 = vrot.slane %v128, %v136
    %v139 = vunpack.c.l.s4 1966171168
    %v140 = vunpack.c.0.s8 %v139
    %v141 = vlaneseq
    %v142 = vshrl.u32 %v141, 7
    %v143 = vsub.s32 %v140, %v142
    %v144 = vrot.slane %v130, %v143
    %v145 = vcombine.high %v137, %v137
    %v146 = vcombine.high %v144, %v144
    %v148 = vunpack.c.l.s4 1966171168
    %v149 = vunpack.c.0.s8 %v148
    %v150 = vlaneseq
    %v151 = vshrl.u32 %v150, 7
    %v152 = vsub.s32 %v149, %v151
    %v153 = vrot.slane %v137, %v152
    %v155 = vunpack.c.l.s4 1966171168
    %v156 = vunpack.c.0.s8 %v155
    %v157 = vlaneseq
    %v158 = vshrl.u32 %v157, 7
    %v159 = vsub.s32 %v156, %v158
    %v160 = vrot.slane %v144, %v159
    %v162 = vunpack.c.l.s4 1966171168
    %v163 = vunpack.c.0.s8 %v162
    %v164 = vlaneseq
    %v165 = vshrl.u32 %v164, 7
    %v166 = vsub.s32 %v163, %v165
    %v167 = vrot.slane %v145, %v166
    %v169 = vunpack.c.l.s4 1966171168
    %v170 = vunpack.c.0.s8 %v169
    %v171 = vlaneseq
    %v172 = vshrl.u32 %v171, 7
    %v173 = vsub.s32 %v170, %v172
    %v174 = vrot.slane %v146, %v173
    %v175 = vcombine.high %v153, %v153
    %v176 = vcombine.high %v160, %v160
    %v177 = vcombine.high %v167, %v167
    %v178 = vcombine.high %v174, %v174
    %v179 = vlaneseq
    %v180 = vshrl.u32 %v179, 7
    %v181 = vsub.s32 0, %v180
    %v182 = vrot.slane %v153, %v181
    %v183 = vlaneseq
    %v184 = vshrl.u32 %v183, 7
    %v185 = vsub.s32 0, %v184
    %v186 = vrot.slane %v167, %v185
    %v187 = vlaneseq
    %v188 = vshrl.u32 %v187, 7
    %v189 = vsub.s32 0, %v188
    %v190 = vrot.slane %v175, %v189
    %v191 = vlaneseq
    %v192 = vshrl.u32 %v191, 7
    %v193 = vsub.s32 0, %v192
    %v194 = vrot.slane %v177, %v193
    %v195 = vlaneseq
    %v196 = vshrl.u32 %v195, 7
    %v197 = vsub.s32 0, %v196
    %v198 = vrot.slane %v160, %v197
    %v199 = vlaneseq
    %v200 = vshrl.u32 %v199, 7
    %v201 = vsub.s32 0, %v200
    %v202 = vrot.slane %v174, %v201
    %v203 = vlaneseq
    %v204 = vshrl.u32 %v203, 7
    %v205 = vsub.s32 0, %v204
    %v206 = vrot.slane %v176, %v205
    %v207 = vlaneseq
    %v208 = vshrl.u32 %v207, 7
    %v209 = vsub.s32 0, %v208
    %v210 = vrot.slane %v178, %v209
    %219 = vrot.lane.b32.xlu0 %v182, 64
    %v220 = vpop.permute.xlu0 %219
    %221 = vrot.lane.b32.xlu0 %v186, 64
    %v222 = vpop.permute.xlu0 %221
    %223 = vrot.lane.b32.xlu0 %v190, 64
    %v224 = vpop.permute.xlu0 %223
    %225 = vrot.lane.b32.xlu0 %v194, 64
    %v226 = vpop.permute.xlu0 %225
    %227 = vrot.lane.b32.xlu0 %v198, 64
    %v228 = vpop.permute.xlu0 %227
    %229 = vrot.lane.b32.xlu0 %v202, 64
    %v230 = vpop.permute.xlu0 %229
    %231 = vrot.lane.b32.xlu0 %v206, 64
    %v232 = vpop.permute.xlu0 %231
    %233 = vrot.lane.b32.xlu0 %v210, 64
    %v234 = vpop.permute.xlu0 %233
    %v243 = vmul.f32 %v107, %v220
    %v244 = vmul.f32 %v107, %v222
    %v245 = vmul.f32 %v107, %v224
    %v246 = vmul.f32 %v107, %v226
    %v247 = vmul.f32 %v107, %v228
    %v248 = vmul.f32 %v107, %v230
    %v249 = vmul.f32 %v107, %v232
    %v250 = vmul.f32 %v107, %v234
    %v251 = vmul.f32 %v113, %v220
    %v252 = vmul.f32 %v113, %v222
    %v253 = vmul.f32 %v113, %v224
    %v254 = vmul.f32 %v113, %v226
    %v255 = vmul.f32 %v113, %v228
    %v256 = vmul.f32 %v113, %v230
    %v257 = vmul.f32 %v113, %v232
    %v258 = vmul.f32 %v113, %v234
    %v259 = vmul.f32 %v109, %v182
    %v260 = vmul.f32 %v109, %v186
    %v261 = vmul.f32 %v109, %v190
    %v262 = vmul.f32 %v109, %v194
    %v263 = vmul.f32 %v109, %v198
    %v264 = vmul.f32 %v109, %v202
    %v265 = vmul.f32 %v109, %v206
    %v266 = vmul.f32 %v109, %v210
    %v267 = vmul.f32 %v115, %v182
    %v268 = vmul.f32 %v115, %v186
    %v269 = vmul.f32 %v115, %v190
    %v270 = vmul.f32 %v115, %v194
    %v271 = vmul.f32 %v115, %v198
    %v272 = vmul.f32 %v115, %v202
    %v273 = vmul.f32 %v115, %v206
    %v274 = vmul.f32 %v115, %v210
    %283 = vrot.lane.b32.xlu0 %v243, 64
    %v284 = vpop.permute.xlu0 %283
    %285 = vrot.lane.b32.xlu0 %v244, 64
    %v286 = vpop.permute.xlu0 %285
    %287 = vrot.lane.b32.xlu0 %v245, 64
    %v288 = vpop.permute.xlu0 %287
    %289 = vrot.lane.b32.xlu0 %v246, 64
    %v290 = vpop.permute.xlu0 %289
    %291 = vrot.lane.b32.xlu0 %v247, 64
    %v292 = vpop.permute.xlu0 %291
    %293 = vrot.lane.b32.xlu0 %v248, 64
    %v294 = vpop.permute.xlu0 %293
    %295 = vrot.lane.b32.xlu0 %v249, 64
    %v296 = vpop.permute.xlu0 %295
    %297 = vrot.lane.b32.xlu0 %v250, 64
    %v298 = vpop.permute.xlu0 %297
    %v300 = vsel %vm33, %v107, 0
    %v302 = vsel %vm33, %v284, 0
    %v304 = vsel %vm33, %v286, 0
    %v306 = vsel %vm33, %v288, 0
    %v308 = vsel %vm33, %v290, 0
    %v310 = vsel %vm33, %v292, 0
    %v312 = vsel %vm33, %v294, 0
    %v314 = vsel %vm33, %v296, 0
    %v316 = vsel %vm33, %v298, 0
    %318 = vmatprep.subr.mxu0 0.0
    %319 = vmatpush1.xpose.msra.mxu0 %v302
    %320 = vmatprep.subr.mxu0 0.0
    %321 = vmatpush1.xpose.msra.mxu0 %v304
    %322 = vmatprep.subr.mxu0 0.0
    %323 = vmatpush1.xpose.msra.mxu0 %v306
    %324 = vmatprep.subr.mxu0 0.0
    %325 = vmatpush1.xpose.msra.mxu0 %v308
    %326 = vmatprep.subr.mxu0 0.0
    %327 = vmatpush1.xpose.msra.mxu0 %v310
    %328 = vmatprep.subr.mxu0 0.0
    %329 = vmatpush1.xpose.msra.mxu0 %v312
    %330 = vmatprep.subr.mxu0 0.0
    %331 = vmatpush1.xpose.msra.mxu0 %v314
    %332 = vmatprep.subr.mxu0 0.0
    %333 = vmatpush1.xpose.msra.mxu0 %v316
    %334 = vmatprep.subr.mxu0 0.0
    %335 = vmatpush1.xpose.msra.mxu0 0.0
    %336 = vmatprep.subr.mxu0 0.0
    %337 = vmatpush1.xpose.msra.mxu0 0.0
    %338 = vmatprep.subr.mxu0 0.0
    %339 = vmatpush1.xpose.msra.mxu0 0.0
    %340 = vmatprep.subr.mxu0 0.0
    %341 = vmatpush1.xpose.msra.mxu0 0.0
    %342 = vmatprep.subr.mxu0 0.0
    %343 = vmatpush1.xpose.msra.mxu0 0.0
    %344 = vmatprep.subr.mxu0 0.0
    %345 = vmatpush1.xpose.msra.mxu0 0.0
    %346 = vmatprep.subr.mxu0 0.0
    %347 = vmatpush1.xpose.msra.mxu0 0.0
    %348 = vmatprep.subr.mxu0 0.0
    %349 = vmatpush1.xpose.msra.mxu0 0.0
    %350 = vmatprep.subr.mxu0 0.0
    %351 = vmatpush1.xpose.msra.mxu0 0.0
    %352 = vmatprep.subr.mxu0 0.0
    %353 = vmatpush1.xpose.msra.mxu0 0.0
    %354 = vmatprep.subr.mxu0 0.0
    %355 = vmatpush1.xpose.msra.mxu0 0.0
    %356 = vmatprep.subr.mxu0 0.0
    %357 = vmatpush1.xpose.msra.mxu0 0.0
    %358 = vmatprep.subr.mxu0 0.0
    %359 = vmatpush1.xpose.msra.mxu0 0.0
    %360 = vmatprep.subr.mxu0 0.0
    %361 = vmatpush1.xpose.msra.mxu0 0.0
    %362 = vmatprep.subr.mxu0 0.0
    %363 = vmatpush1.xpose.msra.mxu0 0.0
    %364 = vmatprep.subr.mxu0 0.0
    %365 = vmatpush1.xpose.msra.mxu0 0.0
    %366 = vmatprep.subr.mxu0 0.0
    %367 = vmatpush1.xpose.msra.mxu0 0.0
    %368 = vmatprep.subr.mxu0 0.0
    %369 = vmatpush1.xpose.msra.mxu0 0.0
    %370 = vmatprep.subr.mxu0 0.0
    %371 = vmatpush1.xpose.msra.mxu0 0.0
    %372 = vmatprep.subr.mxu0 0.0
    %373 = vmatpush1.xpose.msra.mxu0 0.0
    %374 = vmatprep.subr.mxu0 0.0
    %375 = vmatpush1.xpose.msra.mxu0 0.0
    %376 = vmatprep.subr.mxu0 0.0
    %377 = vmatpush1.xpose.msra.mxu0 0.0
    %378 = vmatprep.subr.mxu0 0.0
    %379 = vmatpush1.xpose.msra.mxu0 0.0
    %380 = vmatprep.subr.mxu0 0.0
    %381 = vmatpush1.xpose.msra.mxu0 0.0
    %382 = vmatprep.mubr.f32.mxu0 0.0
    %383 = vmatmul.mubr.f32.gmra.mrb[0].mxu0 %v300
    %v384 = vpop.f32.mrb[0].mxu0
    %v385 = vadd.f32 0.0, %v384
    %v386 = vpop.f32.mrb[0].mxu0
    %387 = vdwg.mxu0
    %396 = vrot.lane.b32.xlu0 %v251, 64
    %v397 = vpop.permute.xlu0 %396
    %398 = vrot.lane.b32.xlu0 %v252, 64
    %v399 = vpop.permute.xlu0 %398
    %400 = vrot.lane.b32.xlu0 %v253, 64
    %v401 = vpop.permute.xlu0 %400
    %402 = vrot.lane.b32.xlu0 %v254, 64
    %v403 = vpop.permute.xlu0 %402
    %404 = vrot.lane.b32.xlu0 %v255, 64
    %v405 = vpop.permute.xlu0 %404
    %406 = vrot.lane.b32.xlu0 %v256, 64
    %v407 = vpop.permute.xlu0 %406
    %408 = vrot.lane.b32.xlu0 %v257, 64
    %v409 = vpop.permute.xlu0 %408
    %410 = vrot.lane.b32.xlu0 %v258, 64
    %v411 = vpop.permute.xlu0 %410
    %v413 = vsel %vm33, %v113, 0
    %v415 = vsel %vm33, %v397, 0
    %v417 = vsel %vm33, %v399, 0
    %v419 = vsel %vm33, %v401, 0
    %v421 = vsel %vm33, %v403, 0
    %v423 = vsel %vm33, %v405, 0
    %v425 = vsel %vm33, %v407, 0
    %v427 = vsel %vm33, %v409, 0
    %v429 = vsel %vm33, %v411, 0
    %431 = vmatprep.subr.mxu0 0.0
    %432 = vmatpush1.xpose.msra.mxu0 %v415
    %433 = vmatprep.subr.mxu0 0.0
    %434 = vmatpush1.xpose.msra.mxu0 %v417
    %435 = vmatprep.subr.mxu0 0.0
    %436 = vmatpush1.xpose.msra.mxu0 %v419
    %437 = vmatprep.subr.mxu0 0.0
    %438 = vmatpush1.xpose.msra.mxu0 %v421
    %439 = vmatprep.subr.mxu0 0.0
    %440 = vmatpush1.xpose.msra.mxu0 %v423
    %441 = vmatprep.subr.mxu0 0.0
    %442 = vmatpush1.xpose.msra.mxu0 %v425
    %443 = vmatprep.subr.mxu0 0.0
    %444 = vmatpush1.xpose.msra.mxu0 %v427
    %445 = vmatprep.subr.mxu0 0.0
    %446 = vmatpush1.xpose.msra.mxu0 %v429
    %447 = vmatprep.subr.mxu0 0.0
    %448 = vmatpush1.xpose.msra.mxu0 0.0
    %449 = vmatprep.subr.mxu0 0.0
    %450 = vmatpush1.xpose.msra.mxu0 0.0
    %451 = vmatprep.subr.mxu0 0.0
    %452 = vmatpush1.xpose.msra.mxu0 0.0
    %453 = vmatprep.subr.mxu0 0.0
    %454 = vmatpush1.xpose.msra.mxu0 0.0
    %455 = vmatprep.subr.mxu0 0.0
    %456 = vmatpush1.xpose.msra.mxu0 0.0
    %457 = vmatprep.subr.mxu0 0.0
    %458 = vmatpush1.xpose.msra.mxu0 0.0
    %459 = vmatprep.subr.mxu0 0.0
    %460 = vmatpush1.xpose.msra.mxu0 0.0
    %461 = vmatprep.subr.mxu0 0.0
    %462 = vmatpush1.xpose.msra.mxu0 0.0
    %463 = vmatprep.subr.mxu0 0.0
    %464 = vmatpush1.xpose.msra.mxu0 0.0
    %465 = vmatprep.subr.mxu0 0.0
    %466 = vmatpush1.xpose.msra.mxu0 0.0
    %467 = vmatprep.subr.mxu0 0.0
    %468 = vmatpush1.xpose.msra.mxu0 0.0
    %469 = vmatprep.subr.mxu0 0.0
    %470 = vmatpush1.xpose.msra.mxu0 0.0
    %471 = vmatprep.subr.mxu0 0.0
    %472 = vmatpush1.xpose.msra.mxu0 0.0
    %473 = vmatprep.subr.mxu0 0.0
    %474 = vmatpush1.xpose.msra.mxu0 0.0
    %475 = vmatprep.subr.mxu0 0.0
    %476 = vmatpush1.xpose.msra.mxu0 0.0
    %477 = vmatprep.subr.mxu0 0.0
    %478 = vmatpush1.xpose.msra.mxu0 0.0
    %479 = vmatprep.subr.mxu0 0.0
    %480 = vmatpush1.xpose.msra.mxu0 0.0
    %481 = vmatprep.subr.mxu0 0.0
    %482 = vmatpush1.xpose.msra.mxu0 0.0
    %483 = vmatprep.subr.mxu0 0.0
    %484 = vmatpush1.xpose.msra.mxu0 0.0
    %485 = vmatprep.subr.mxu0 0.0
    %486 = vmatpush1.xpose.msra.mxu0 0.0
    %487 = vmatprep.subr.mxu0 0.0
    %488 = vmatpush1.xpose.msra.mxu0 0.0
    %489 = vmatprep.subr.mxu0 0.0
    %490 = vmatpush1.xpose.msra.mxu0 0.0
    %491 = vmatprep.subr.mxu0 0.0
    %492 = vmatpush1.xpose.msra.mxu0 0.0
    %493 = vmatprep.subr.mxu0 0.0
    %494 = vmatpush1.xpose.msra.mxu0 0.0
    %495 = vmatprep.mubr.f32.mxu0 0.0
    %496 = vmatmul.mubr.f32.gmra.mrb[0].mxu0 %v413
    %v497 = vpop.f32.mrb[0].mxu0
    %v498 = vadd.f32 0.0, %v497
    %v499 = vpop.f32.mrb[0].mxu0
    %500 = vdwg.mxu0
    %v501 = vsel %vm33, %v385, -inf
    %502 = vmax.xlane.f32.xlu0 %v501
    %v503 = vpop.xlane.xlu0 %502
    %v504 = vsel %vm33, %v498, -inf
    %505 = vmax.xlane.f32.xlu0 %v504
    %v506 = vpop.xlane.xlu0 %505
    %v507 = vsub.f32 %v385, %v503
    %v508 = vsub.f32 %v498, %v506
    %v509 = vmul.f32 %v507, 1.442695
    %v510 = vpow.pop %v509
    %v511 = vmul.f32 %v508, 1.442695
    %v512 = vpow.pop %v511
    %v513 = vadd.s32 %v120, 8
    %v514 = vadd.s32 %v120, 16
    %v515 = vadd.s32 %v120, 24
    %v516 = vadd.s32 %v120, 32
    %v517 = vadd.s32 %v120, 40
    %v518 = vadd.s32 %v120, 48
    %v519 = vadd.s32 %v120, 56
    %v520 = vmul.u32 %v118, 8
    %vm521 = vcmp.ge.s32.totalorder %v120, %v520
    %vm522 = vcmp.ge.s32.totalorder %v513, %v520
    %vm523 = vcmp.ge.s32.totalorder %v514, %v520
    %vm524 = vcmp.ge.s32.totalorder %v515, %v520
    %vm525 = vcmp.ge.s32.totalorder %v516, %v520
    %vm526 = vcmp.ge.s32.totalorder %v517, %v520
    %vm527 = vcmp.ge.s32.totalorder %v518, %v520
    %vm528 = vcmp.ge.s32.totalorder %v519, %v520
    %v529 = vadd.s32 %v118, 1
    %v530 = vmul.u32 %v529, 8
    %vm531 = vcmp.lt.s32.totalorder %v120, %v530
    %vm532 = vcmp.lt.s32.totalorder %v513, %v530
    %vm533 = vcmp.lt.s32.totalorder %v514, %v530
    %vm534 = vcmp.lt.s32.totalorder %v515, %v530
    %vm535 = vcmp.lt.s32.totalorder %v516, %v530
    %vm536 = vcmp.lt.s32.totalorder %v517, %v530
    %vm537 = vcmp.lt.s32.totalorder %v518, %v530
    %vm538 = vcmp.lt.s32.totalorder %v519, %v530
    %vm539 = vmand %vm521, %vm531
    %vm540 = vmand %vm522, %vm532
    %vm541 = vmand %vm523, %vm533
    %vm542 = vmand %vm524, %vm534
    %vm543 = vmand %vm525, %vm535
    %vm544 = vmand %vm526, %vm536
    %vm545 = vmand %vm527, %vm537
    %vm546 = vmand %vm528, %vm538
    %v547 = vsel %vm539, 1, 0
    %v548 = vsel %vm540, 1, 0
    %v549 = vsel %vm541, 1, 0
    %v550 = vsel %vm542, 1, 0
    %v551 = vsel %vm543, 1, 0
    %v552 = vsel %vm544, 1, 0
    %v553 = vsel %vm545, 1, 0
    %v554 = vsel %vm546, 1, 0
    %v555 = vcvt.s32.f32 %v547
    %v556 = vcvt.s32.f32 %v548
    %v557 = vcvt.s32.f32 %v549
    %v558 = vcvt.s32.f32 %v550
    %v559 = vcvt.s32.f32 %v551
    %v560 = vcvt.s32.f32 %v552
    %v561 = vcvt.s32.f32 %v553
    %v562 = vcvt.s32.f32 %v554
    %v564 = vsel %vm33, %v510, 0
    %v567 = vsel %vm33, %v512, 0
    %569 = vmatprep.subr.mxu0 0.0
    %570 = vmatpush1.msra.mxu0 %v555
    %571 = vmatprep.subr.mxu0 0.0
    %572 = vmatpush1.msra.mxu0 %v556
    %573 = vmatprep.subr.mxu0 0.0
    %574 = vmatpush1.msra.mxu0 %v557
    %575 = vmatprep.subr.mxu0 0.0
    %576 = vmatpush1.msra.mxu0 %v558
    %577 = vmatprep.subr.mxu0 0.0
    %578 = vmatpush1.msra.mxu0 %v559
    %579 = vmatprep.subr.mxu0 0.0
    %580 = vmatpush1.msra.mxu0 %v560
    %581 = vmatprep.subr.mxu0 0.0
    %582 = vmatpush1.msra.mxu0 %v561
    %583 = vmatprep.subr.mxu0 0.0
    %584 = vmatpush1.msra.mxu0 %v562
    %585 = vmatprep.subr.mxu0 0.0
    %586 = vmatpush1.msra.mxu0 0.0
    %587 = vmatprep.subr.mxu0 0.0
    %588 = vmatpush1.msra.mxu0 0.0
    %589 = vmatprep.subr.mxu0 0.0
    %590 = vmatpush1.msra.mxu0 0.0
    %591 = vmatprep.subr.mxu0 0.0
    %592 = vmatpush1.msra.mxu0 0.0
    %593 = vmatprep.subr.mxu0 0.0
    %594 = vmatpush1.msra.mxu0 0.0
    %595 = vmatprep.subr.mxu0 0.0
    %596 = vmatpush1.msra.mxu0 0.0
    %597 = vmatprep.subr.mxu0 0.0
    %598 = vmatpush1.msra.mxu0 0.0
    %599 = vmatprep.subr.mxu0 0.0
    %600 = vmatpush1.msra.mxu0 0.0
    %601 = vmatprep.subr.mxu0 0.0
    %602 = vmatpush1.msra.mxu0 0.0
    %603 = vmatprep.subr.mxu0 0.0
    %604 = vmatpush1.msra.mxu0 0.0
    %605 = vmatprep.subr.mxu0 0.0
    %606 = vmatpush1.msra.mxu0 0.0
    %607 = vmatprep.subr.mxu0 0.0
    %608 = vmatpush1.msra.mxu0 0.0
    %609 = vmatprep.subr.mxu0 0.0
    %610 = vmatpush1.msra.mxu0 0.0
    %611 = vmatprep.subr.mxu0 0.0
    %612 = vmatpush1.msra.mxu0 0.0
    %613 = vmatprep.subr.mxu0 0.0
    %614 = vmatpush1.msra.mxu0 0.0
    %615 = vmatprep.subr.mxu0 0.0
    %616 = vmatpush1.msra.mxu0 0.0
    %617 = vmatprep.subr.mxu0 0.0
    %618 = vmatpush1.msra.mxu0 0.0
    %619 = vmatprep.subr.mxu0 0.0
    %620 = vmatpush1.msra.mxu0 0.0
    %621 = vmatprep.subr.mxu0 0.0
    %622 = vmatpush1.msra.mxu0 0.0
    %623 = vmatprep.subr.mxu0 0.0
    %624 = vmatpush1.msra.mxu0 0.0
    %625 = vmatprep.subr.mxu0 0.0
    %626 = vmatpush1.msra.mxu0 0.0
    %627 = vmatprep.subr.mxu0 0.0
    %628 = vmatpush1.msra.mxu0 0.0
    %629 = vmatprep.subr.mxu0 0.0
    %630 = vmatpush1.msra.mxu0 0.0
    %631 = vmatprep.subr.mxu0 0.0
    %632 = vmatpush1.msra.mxu0 0.0
    %633 = vmatprep.mubr.f32.mxu0 0.0
    %634 = vmatmul.mubr.f32.gmra.mrb[0].mxu0 %v564
    %v635 = vpop.f32.mrb[0].mxu0
    %v636 = vadd.f32 0.0, %v635
    %v637 = vpop.f32.mrb[0].mxu0
    %638 = vmatprep.mubr.f32.mxu0 0.0
    %639 = vmatmul.mubr.f32.gmra.mrb[0].mxu0 %v567
    %v640 = vpop.f32.mrb[0].mxu0
    %v641 = vadd.f32 0.0, %v640
    %v642 = vpop.f32.mrb[0].mxu0
    %643 = vdwg.mxu0
    %vm644 = vcmask 64512
    %v646 = vsel %vm644, %v636, 0
    %v649 = vsel %vm644, %v641, 0
    %651 = vmatprep.subr.mxu0 0.0
    %652 = vmatpush1.msra.mxu0 %v128
    %653 = vmatprep.subr.mxu0 0.0
    %654 = vmatpush1.msra.mxu0 0.0
    %655 = vmatprep.subr.mxu0 0.0
    %656 = vmatpush1.msra.mxu0 0.0
    %657 = vmatprep.subr.mxu0 0.0
    %658 = vmatpush1.msra.mxu0 0.0
    %659 = vmatprep.subr.mxu0 0.0
    %660 = vmatpush1.msra.mxu0 0.0
    %661 = vmatprep.subr.mxu0 0.0
    %662 = vmatpush1.msra.mxu0 0.0
    %663 = vmatprep.subr.mxu0 0.0
    %664 = vmatpush1.msra.mxu0 0.0
    %665 = vmatprep.subr.mxu0 0.0
    %666 = vmatpush1.msra.mxu0 0.0
    %667 = vmatprep.subr.mxu0 0.0
    %668 = vmatpush1.msra.mxu0 0.0
    %669 = vmatprep.subr.mxu0 0.0
    %670 = vmatpush1.msra.mxu0 0.0
    %671 = vmatprep.subr.mxu0 0.0
    %672 = vmatpush1.msra.mxu0 0.0
    %673 = vmatprep.subr.mxu0 0.0
    %674 = vmatpush1.msra.mxu0 0.0
    %675 = vmatprep.subr.mxu0 0.0
    %676 = vmatpush1.msra.mxu0 0.0
    %677 = vmatprep.subr.mxu0 0.0
    %678 = vmatpush1.msra.mxu0 0.0
    %679 = vmatprep.subr.mxu0 0.0
    %680 = vmatpush1.msra.mxu0 0.0
    %681 = vmatprep.subr.mxu0 0.0
    %682 = vmatpush1.msra.mxu0 0.0
    %683 = vmatprep.subr.mxu0 0.0
    %684 = vmatpush1.msra.mxu0 0.0
    %685 = vmatprep.subr.mxu0 0.0
    %686 = vmatpush1.msra.mxu0 0.0
    %687 = vmatprep.subr.mxu0 0.0
    %688 = vmatpush1.msra.mxu0 0.0
    %689 = vmatprep.subr.mxu0 0.0
    %690 = vmatpush1.msra.mxu0 0.0
    %691 = vmatprep.subr.mxu0 0.0
    %692 = vmatpush1.msra.mxu0 0.0
    %693 = vmatprep.subr.mxu0 0.0
    %694 = vmatpush1.msra.mxu0 0.0
    %695 = vmatprep.subr.mxu0 0.0
    %696 = vmatpush1.msra.mxu0 0.0
    %697 = vmatprep.subr.mxu0 0.0
    %698 = vmatpush1.msra.mxu0 0.0
    %699 = vmatprep.subr.mxu0 0.0
    %700 = vmatpush1.msra.mxu0 0.0
    %701 = vmatprep.subr.mxu0 0.0
    %702 = vmatpush1.msra.mxu0 0.0
    %703 = vmatprep.subr.mxu0 0.0
    %704 = vmatpush1.msra.mxu0 0.0
    %705 = vmatprep.subr.mxu0 0.0
    %706 = vmatpush1.msra.mxu0 0.0
    %707 = vmatprep.subr.mxu0 0.0
    %708 = vmatpush1.msra.mxu0 0.0
    %709 = vmatprep.subr.mxu0 0.0
    %710 = vmatpush1.msra.mxu0 0.0
    %711 = vmatprep.subr.mxu0 0.0
    %712 = vmatpush1.msra.mxu0 0.0
    %713 = vmatprep.subr.mxu0 0.0
    %714 = vmatpush1.msra.mxu0 0.0
    %715 = vmatprep.mubr.f32.mxu0 0.0
    %716 = vmatmul.mubr.f32.gmra.mrb[0].mxu0 %v646
    %v717 = vpop.f32.mrb[0].mxu0
    %v718 = vadd.f32 0.0, %v717
    %v719 = vpop.f32.mrb[0].mxu0
    %720 = vmatprep.mubr.f32.mxu0 0.0
    %721 = vmatmul.mubr.f32.gmra.mrb[0].mxu0 %v649
    %v722 = vpop.f32.mrb[0].mxu0
    %v723 = vadd.f32 0.0, %v722
    %v724 = vpop.f32.mrb[0].mxu0
    %725 = vdwg.mxu0
    %v726 = vrcp.pop %v718
    %v727 = vrcp.pop %v723
    %v728 = vmul.f32 %v510, %v726
    %v729 = vmul.f32 %v512, %v727
    %v731 = vsel %vm33, %v728, 0
    %733 = vmatprep.subr.mxu0 0.0
    %734 = vmatpush1.msra.mxu0 %v259
    %735 = vmatprep.subr.mxu0 0.0
    %736 = vmatpush1.msra.mxu0 %v260
    %737 = vmatprep.subr.mxu0 0.0
    %738 = vmatpush1.msra.mxu0 %v261
    %739 = vmatprep.subr.mxu0 0.0
    %740 = vmatpush1.msra.mxu0 %v262
    %741 = vmatprep.subr.mxu0 0.0
    %742 = vmatpush1.msra.mxu0 %v263
    %743 = vmatprep.subr.mxu0 0.0
    %744 = vmatpush1.msra.mxu0 %v264
    %745 = vmatprep.subr.mxu0 0.0
    %746 = vmatpush1.msra.mxu0 %v265
    %747 = vmatprep.subr.mxu0 0.0
    %748 = vmatpush1.msra.mxu0 %v266
    %749 = vmatprep.subr.mxu0 0.0
    %750 = vmatpush1.msra.mxu0 0.0
    %751 = vmatprep.subr.mxu0 0.0
    %752 = vmatpush1.msra.mxu0 0.0
    %753 = vmatprep.subr.mxu0 0.0
    %754 = vmatpush1.msra.mxu0 0.0
    %755 = vmatprep.subr.mxu0 0.0
    %756 = vmatpush1.msra.mxu0 0.0
    %757 = vmatprep.subr.mxu0 0.0
    %758 = vmatpush1.msra.mxu0 0.0
    %759 = vmatprep.subr.mxu0 0.0
    %760 = vmatpush1.msra.mxu0 0.0
    %761 = vmatprep.subr.mxu0 0.0
    %762 = vmatpush1.msra.mxu0 0.0
    %763 = vmatprep.subr.mxu0 0.0
    %764 = vmatpush1.msra.mxu0 0.0
    %765 = vmatprep.subr.mxu0 0.0
    %766 = vmatpush1.msra.mxu0 0.0
    %767 = vmatprep.subr.mxu0 0.0
    %768 = vmatpush1.msra.mxu0 0.0
    %769 = vmatprep.subr.mxu0 0.0
    %770 = vmatpush1.msra.mxu0 0.0
    %771 = vmatprep.subr.mxu0 0.0
    %772 = vmatpush1.msra.mxu0 0.0
    %773 = vmatprep.subr.mxu0 0.0
    %774 = vmatpush1.msra.mxu0 0.0
    %775 = vmatprep.subr.mxu0 0.0
    %776 = vmatpush1.msra.mxu0 0.0
    %777 = vmatprep.subr.mxu0 0.0
    %778 = vmatpush1.msra.mxu0 0.0
    %779 = vmatprep.subr.mxu0 0.0
    %780 = vmatpush1.msra.mxu0 0.0
    %781 = vmatprep.subr.mxu0 0.0
    %782 = vmatpush1.msra.mxu0 0.0
    %783 = vmatprep.subr.mxu0 0.0
    %784 = vmatpush1.msra.mxu0 0.0
    %785 = vmatprep.subr.mxu0 0.0
    %786 = vmatpush1.msra.mxu0 0.0
    %787 = vmatprep.subr.mxu0 0.0
    %788 = vmatpush1.msra.mxu0 0.0
    %789 = vmatprep.subr.mxu0 0.0
    %790 = vmatpush1.msra.mxu0 0.0
    %791 = vmatprep.subr.mxu0 0.0
    %792 = vmatpush1.msra.mxu0 0.0
    %793 = vmatprep.subr.mxu0 0.0
    %794 = vmatpush1.msra.mxu0 0.0
    %795 = vmatprep.subr.mxu0 0.0
    %796 = vmatpush1.msra.mxu0 0.0
    %797 = vmatprep.mubr.f32.mxu0 0.0
    %798 = vmatmul.mubr.f32.gmra.mrb[0].mxu0 %v731
    %v799 = vpop.f32.mrb[0].mxu0
    %v800 = vadd.f32 0.0, %v799
    %v801 = vpop.f32.mrb[0].mxu0
    %802 = vdwg.mxu0
    %v804 = vsel %vm33, %v729, 0
    %806 = vmatprep.subr.mxu0 0.0
    %807 = vmatpush1.msra.mxu0 %v267
    %808 = vmatprep.subr.mxu0 0.0
    %809 = vmatpush1.msra.mxu0 %v268
    %810 = vmatprep.subr.mxu0 0.0
    %811 = vmatpush1.msra.mxu0 %v269
    %812 = vmatprep.subr.mxu0 0.0
    %813 = vmatpush1.msra.mxu0 %v270
    %814 = vmatprep.subr.mxu0 0.0
    %815 = vmatpush1.msra.mxu0 %v271
    %816 = vmatprep.subr.mxu0 0.0
    %817 = vmatpush1.msra.mxu0 %v272
    %818 = vmatprep.subr.mxu0 0.0
    %819 = vmatpush1.msra.mxu0 %v273
    %820 = vmatprep.subr.mxu0 0.0
    %821 = vmatpush1.msra.mxu0 %v274
    %822 = vmatprep.subr.mxu0 0.0
    %823 = vmatpush1.msra.mxu0 0.0
    %824 = vmatprep.subr.mxu0 0.0
    %825 = vmatpush1.msra.mxu0 0.0
    %826 = vmatprep.subr.mxu0 0.0
    %827 = vmatpush1.msra.mxu0 0.0
    %828 = vmatprep.subr.mxu0 0.0
    %829 = vmatpush1.msra.mxu0 0.0
    %830 = vmatprep.subr.mxu0 0.0
    %831 = vmatpush1.msra.mxu0 0.0
    %832 = vmatprep.subr.mxu0 0.0
    %833 = vmatpush1.msra.mxu0 0.0
    %834 = vmatprep.subr.mxu0 0.0
    %835 = vmatpush1.msra.mxu0 0.0
    %836 = vmatprep.subr.mxu0 0.0
    %837 = vmatpush1.msra.mxu0 0.0
    %838 = vmatprep.subr.mxu0 0.0
    %839 = vmatpush1.msra.mxu0 0.0
    %840 = vmatprep.subr.mxu0 0.0
    %841 = vmatpush1.msra.mxu0 0.0
    %842 = vmatprep.subr.mxu0 0.0
    %843 = vmatpush1.msra.mxu0 0.0
    %844 = vmatprep.subr.mxu0 0.0
    %845 = vmatpush1.msra.mxu0 0.0
    %846 = vmatprep.subr.mxu0 0.0
    %847 = vmatpush1.msra.mxu0 0.0
    %848 = vmatprep.subr.mxu0 0.0
    %849 = vmatpush1.msra.mxu0 0.0
    %850 = vmatprep.subr.mxu0 0.0
    %851 = vmatpush1.msra.mxu0 0.0
    %852 = vmatprep.subr.mxu0 0.0
    %853 = vmatpush1.msra.mxu0 0.0
    %854 = vmatprep.subr.mxu0 0.0
    %855 = vmatpush1.msra.mxu0 0.0
    %856 = vmatprep.subr.mxu0 0.0
    %857 = vmatpush1.msra.mxu0 0.0
    %858 = vmatprep.subr.mxu0 0.0
    %859 = vmatpush1.msra.mxu0 0.0
    %860 = vmatprep.subr.mxu0 0.0
    %861 = vmatpush1.msra.mxu0 0.0
    %862 = vmatprep.subr.mxu0 0.0
    %863 = vmatpush1.msra.mxu0 0.0
    %864 = vmatprep.subr.mxu0 0.0
    %865 = vmatpush1.msra.mxu0 0.0
    %866 = vmatprep.subr.mxu0 0.0
    %867 = vmatpush1.msra.mxu0 0.0
    %868 = vmatprep.subr.mxu0 0.0
    %869 = vmatpush1.msra.mxu0 0.0
    %870 = vmatprep.mubr.f32.mxu0 0.0
    %871 = vmatmul.mubr.f32.gmra.mrb[0].mxu0 %v804
    %v872 = vpop.f32.mrb[0].mxu0
    %v873 = vadd.f32 0.0, %v872
    %v874 = vpop.f32.mrb[0].mxu0
    %875 = vdwg.mxu0
    %v876 = vsel %vm33, %v800, -inf
    %v877 = vsel %vm33, %v873, -inf
    %v878 = vmax.f32 %v876, %v877
    %879 = vmax.xlane.f32.xlu0 %v878
    %v880 = vpop.xlane.xlu0 %879
    %v881 = vrot.slane %v880, 4
    %v882 = vmax.f32 %v880, %v881
    %v883 = vrot.slane %v882, 2
    %v884 = vmax.f32 %v882, %v883
    %v885 = vrot.slane %v884, 1
    %v886 = vmax.f32 %v884, %v885
    %s887 = vtos %v886
    %p888 = scmp.gt.f32.partialorder %s887, 1.0
    %s889 = smax.f32 %s887, 1.0
    %v890 = vstv %s889
    %v891 = vrsqrt.pop %v890
    %v892 = vmul.f32 %v890, %v891
    %vm893 = vcmp.eq.f32.partialorder %v890, inf
    %v894 = vsel %vm893, %v890, %v892
    %vm895 = vcmp.eq.f32.partialorder %v890, 0.0
    %v896 = vand.u32 %v890, 2147483648
    %v897 = vsel %vm895, %v896, %v894
    %s898 = vtos %v897
    %v899 = vstv %s898
    %v900 = vrcp.pop %v899
    %s901 = vtos %v900
    %s902 = scalar_select %p888, %s901, 1.0
    %v903 = vstv %s902
    %v904 = vmul.f32 %v800, %v903
    %v905 = vmul.f32 %v873, %v903
    %v906 = vld [vmem:[%s2] sm:$0xff]
    %v907 = vld [vmem:[%s2 + $0x8] sm:$0xff]
    %v908 = vld [vmem:[%s2 + $0x10] sm:$0xff]
    %v909 = vld [vmem:[%s2 + $0x18] sm:$0xff]
    %v910 = vld [vmem:[%s2 + $0x20] sm:$0xff]
    %v911 = vld [vmem:[%s2 + $0x28] sm:$0xff]
    %v912 = vld [vmem:[%s2 + $0x30] sm:$0xff]
    %v913 = vld [vmem:[%s2 + $0x38] sm:$0xff]
    %v915 = vsel %vm33, %v904, 0
    %v918 = vsel %vm33, %v905, 0
    %920 = vmatprep.subr.mxu0 0.0
    %921 = vmatpush1.msra.mxu0 %v906
    %922 = vmatprep.subr.mxu0 0.0
    %923 = vmatpush1.msra.mxu0 %v907
    %924 = vmatprep.subr.mxu0 0.0
    %925 = vmatpush1.msra.mxu0 %v908
    %926 = vmatprep.subr.mxu0 0.0
    %927 = vmatpush1.msra.mxu0 %v909
    %928 = vmatprep.subr.mxu0 0.0
    %929 = vmatpush1.msra.mxu0 %v910
    %930 = vmatprep.subr.mxu0 0.0
    %931 = vmatpush1.msra.mxu0 %v911
    %932 = vmatprep.subr.mxu0 0.0
    %933 = vmatpush1.msra.mxu0 %v912
    %934 = vmatprep.subr.mxu0 0.0
    %935 = vmatpush1.msra.mxu0 %v913
    %936 = vmatprep.subr.mxu0 0.0
    %937 = vmatpush1.msra.mxu0 0.0
    %938 = vmatprep.subr.mxu0 0.0
    %939 = vmatpush1.msra.mxu0 0.0
    %940 = vmatprep.subr.mxu0 0.0
    %941 = vmatpush1.msra.mxu0 0.0
    %942 = vmatprep.subr.mxu0 0.0
    %943 = vmatpush1.msra.mxu0 0.0
    %944 = vmatprep.subr.mxu0 0.0
    %945 = vmatpush1.msra.mxu0 0.0
    %946 = vmatprep.subr.mxu0 0.0
    %947 = vmatpush1.msra.mxu0 0.0
    %948 = vmatprep.subr.mxu0 0.0
    %949 = vmatpush1.msra.mxu0 0.0
    %950 = vmatprep.subr.mxu0 0.0
    %951 = vmatpush1.msra.mxu0 0.0
    %952 = vmatprep.subr.mxu0 0.0
    %953 = vmatpush1.msra.mxu0 0.0
    %954 = vmatprep.subr.mxu0 0.0
    %955 = vmatpush1.msra.mxu0 0.0
    %956 = vmatprep.subr.mxu0 0.0
    %957 = vmatpush1.msra.mxu0 0.0
    %958 = vmatprep.subr.mxu0 0.0
    %959 = vmatpush1.msra.mxu0 0.0
    %960 = vmatprep.subr.mxu0 0.0
    %961 = vmatpush1.msra.mxu0 0.0
    %962 = vmatprep.subr.mxu0 0.0
    %963 = vmatpush1.msra.mxu0 0.0
    %964 = vmatprep.subr.mxu0 0.0
    %965 = vmatpush1.msra.mxu0 0.0
    %966 = vmatprep.subr.mxu0 0.0
    %967 = vmatpush1.msra.mxu0 0.0
    %968 = vmatprep.subr.mxu0 0.0
    %969 = vmatpush1.msra.mxu0 0.0
    %970 = vmatprep.subr.mxu0 0.0
    %971 = vmatpush1.msra.mxu0 0.0
    %972 = vmatprep.subr.mxu0 0.0
    %973 = vmatpush1.msra.mxu0 0.0
    %974 = vmatprep.subr.mxu0 0.0
    %975 = vmatpush1.msra.mxu0 0.0
    %976 = vmatprep.subr.mxu0 0.0
    %977 = vmatpush1.msra.mxu0 0.0
    %978 = vmatprep.subr.mxu0 0.0
    %979 = vmatpush1.msra.mxu0 0.0
    %980 = vmatprep.subr.mxu0 0.0
    %981 = vmatpush1.msra.mxu0 0.0
    %982 = vmatprep.subr.mxu0 0.0
    %983 = vmatpush1.msra.mxu0 0.0
    %984 = vmatprep.mubr.f32.mxu0 0.0
    %985 = vmatmul.mubr.f32.gmra.mrb[0].mxu0 %v915
    %v986 = vpop.f32.mrb[0].mxu0
    %v987 = vadd.f32 0.0, %v986
    %v988 = vpop.f32.mrb[0].mxu0
    %989 = vmatprep.mubr.f32.mxu0 0.0
    %990 = vmatmul.mubr.f32.gmra.mrb[0].mxu0 %v918
    %v991 = vpop.f32.mrb[0].mxu0
    %v992 = vadd.f32 0.0, %v991
    %v993 = vpop.f32.mrb[0].mxu0
    %994 = vdwg.mxu0
    %995 = vst.msk [vmem:[#allocation2] sm:$0xff] %vm33, %v987
    %996 = vst.msk [vmem:[#allocation2 + $0x8] sm:$0xff] %vm33, %v992
    // Predicated region
    $region14: #{multi_head_attention.1} parent=1 // pred_check
      _
    $region15: #{multi_head_attention.1} parent=1 // pred_check_branch
      %998 = sbr.rel (0) target = $region17
    $region16: #{multi_head_attention.1} parent=1 // pred_region
      %s1000 = ssub.s32 256, 256
      %1001 = vsyncadd [#allocation3], %s1000
      %s1002 = sshll.u32 [#allocation2], 4
      %s1003 = int_to_ptr.vmem [resolvable:$true] %s1002
      %1008 = dma.vmem_to_hbm [thread:$0]  %s1003, 256, %s3, [#allocation3], 128, 128, 8
    $region17: #{multi_head_attention.1} parent=1 // pred_fallthru
      _
    // Predicated region
    $region18: #{multi_head_attention.1} parent=1 // pred_check
      _
    $region19: #{multi_head_attention.1} parent=1 // pred_check_branch
      %1010 = sbr.rel (0) target = $region21
    $region20: #{multi_head_attention.1} parent=1 // pred_region
      %1011 = dma.done [#allocation3], 256
    $region21: #{multi_head_attention.1} parent=1 // pred_fallthru
      _
    %1012 = vsyncpa [#allocation3], 1

</llo_original>
